<compile_context>
chip_gen: v7x
topology: tpu7x:2x2x1
jax: 0.10.0
libtpu: 0.0.40
codegen_flags: <defaults>
</compile_context>

<pallas_src>
import functools

import jax
import jax.numpy as jnp
from jax.experimental import pallas as pl
from jax.experimental.pallas import tpu as pltpu

N_CHANNELS = 5
N = 14
IN_FEATURES = N_CHANNELS * N          # 70
HIDDEN = 32
PAD = 128                              # lane-aligned width for hidden/output
NEG_SLOPE = 0.2
MAX_TB = 1024                          # batch-tile upper bound (sweep 1024-2048)


def _leaky(v):
    # max(v, 0.2*v) == LeakyReLU(0.2) for all finite v (one vmul + one vmax).
    return jnp.maximum(v, NEG_SLOPE * v)


# ----------------------------------------------------------------------------
# Pallas kernel: 3 x (bf16 matmul -> f32 acc -> bias + LeakyReLU in f32).
# ----------------------------------------------------------------------------
def formant_kernel(x_ref, w1_ref, b1_ref, w2_ref, b2_ref, w3_ref, b3_ref, o_ref):
    # x tile: (TB, 70) f32 -> bf16 for the MXU (cast is VPU work, free at the
    # memory bound and avoids a separate wrapper-side cast pass over HBM).
    h = jnp.dot(x_ref[...].astype(jnp.bfloat16), w1_ref[...],
                preferred_element_type=jnp.float32) + b1_ref[...]
    h = _leaky(h)                                                     # (TB,128) f32
    h = jnp.dot(h.astype(jnp.bfloat16), w2_ref[...],
                preferred_element_type=jnp.float32) + b2_ref[...]
    h = _leaky(h)
    h = jnp.dot(h.astype(jnp.bfloat16), w3_ref[...],
                preferred_element_type=jnp.float32) + b3_ref[...]
    o_ref[...] = _leaky(h).astype(o_ref.dtype)                        # (TB,128) f32


# ----------------------------------------------------------------------------
# Parameter construction (torch Linear layout: weight = (out, in)).
# ----------------------------------------------------------------------------
def make_params(key):
    ks = jax.random.split(key, 6)
    return {
        "w1": 0.1 * jax.random.normal(ks[0], (HIDDEN, IN_FEATURES), jnp.float32),
        "b1": 0.1 * jax.random.normal(ks[1], (HIDDEN,), jnp.float32),
        "w2": 0.1 * jax.random.normal(ks[2], (HIDDEN, HIDDEN), jnp.float32),
        "b2": 0.1 * jax.random.normal(ks[3], (HIDDEN,), jnp.float32),
        "w3": 0.1 * jax.random.normal(ks[4], (IN_FEATURES, HIDDEN), jnp.float32),
        "b3": 0.1 * jax.random.normal(ks[5], (IN_FEATURES,), jnp.float32),
    }


def build_operands(p):
    """Kernel operands: weights transposed to (in, out), zero-padded on the
    output-lane axis to 128 and cast to bf16; biases zero-padded to (1, 128)
    in f32.  Zero-padded lanes stay exactly zero through max(v, 0.2*v), so the
    math matches the unpadded module.  Raw f32 params are kept for the
    optional small-batch XLA fallback."""
    w1p = jnp.zeros((IN_FEATURES, PAD), jnp.float32).at[:, :HIDDEN].set(p["w1"].T)
    w2p = jnp.zeros((PAD, PAD), jnp.float32).at[:HIDDEN, :HIDDEN].set(p["w2"].T)
    w3p = jnp.zeros((PAD, PAD), jnp.float32).at[:HIDDEN, :IN_FEATURES].set(p["w3"].T)
    b1p = jnp.zeros((1, PAD), jnp.float32).at[0, :HIDDEN].set(p["b1"])
    b2p = jnp.zeros((1, PAD), jnp.float32).at[0, :HIDDEN].set(p["b2"])
    b3p = jnp.zeros((1, PAD), jnp.float32).at[0, :IN_FEATURES].set(p["b3"])
    ops = {
        "w1p": w1p.astype(jnp.bfloat16),
        "w2p": w2p.astype(jnp.bfloat16),
        "w3p": w3p.astype(jnp.bfloat16),
        "b1p": b1p, "b2p": b2p, "b3p": b3p,
    }
    ops.update({k: p[k] for k in ("w1", "b1", "w2", "b2", "w3", "b3")})
    return ops


def _xla_forward(xf, ops):
    h = _leaky(xf @ ops["w1"].T + ops["b1"])
    h = _leaky(h @ ops["w2"].T + ops["b2"])
    h = _leaky(h @ ops["w3"].T + ops["b3"])
    return h


def _round_up(v, m):
    return -(-v // m) * m


# ----------------------------------------------------------------------------
# Wrapper
# ----------------------------------------------------------------------------
@functools.partial(jax.jit, static_argnames=("out_padded", "xla_fallback_below"))
def formant_transformer_forward(x, ops, *, out_padded=False, xla_fallback_below=0):
    B, C, Nn = x.shape
    assert C == N_CHANNELS and Nn == N
    xf = x.reshape(B, IN_FEATURES)                 # free bitcast, stays f32 / 70 wide

    if B < xla_fallback_below:
        # Tiny batches: XLA's fused dot chain beats a single-step pallas_call.
        out = _xla_forward(xf, ops)
        if out_padded:
            return jnp.pad(out, ((0, 0), (0, PAD - IN_FEATURES)))
        return out.reshape(B, C, Nn)

    # Batch tile: big enough to amortize per-step overhead, but always >= 2
    # grid steps when B > 8 so both v7x TensorCores get work.
    if B <= 8:
        tb = 8
    else:
        tb = min(MAX_TB, _round_up(-(-B // 2), 8))
    grid = (pl.cdiv(B, tb),)                       # uneven last tile handled by Pallas

    weight_spec_1 = pl.BlockSpec((IN_FEATURES, PAD), lambda i: (0, 0))  # (70, 128)
    weight_spec_h = pl.BlockSpec((PAD, PAD), lambda i: (0, 0))          # (128, 128)
    bias_spec = pl.BlockSpec((1, PAD), lambda i: (0, 0))

    flops = 2 * B * (IN_FEATURES * PAD + 2 * PAD * PAD)
    bytes_accessed = (4 * B * IN_FEATURES + 4 * B * PAD
                      + 2 * (IN_FEATURES * PAD + 2 * PAD * PAD) + 4 * 3 * PAD)

    out = pl.pallas_call(
        formant_kernel,
        out_shape=jax.ShapeDtypeStruct((B, PAD), jnp.float32),
        grid=grid,
        in_specs=[
            pl.BlockSpec((tb, IN_FEATURES), lambda i: (i, 0)),   # activations, batch-tiled
            weight_spec_1, bias_spec,
            weight_spec_h, bias_spec,
            weight_spec_h, bias_spec,
        ],
        out_specs=pl.BlockSpec((tb, PAD), lambda i: (i, 0)),      # lane-dense (128) output
        compiler_params=pltpu.CompilerParams(
            dimension_semantics=("parallel",)),
        cost_estimate=pl.CostEstimate(
            flops=flops, transcendentals=0, bytes_accessed=bytes_accessed),
    )(xf, ops["w1p"], ops["b1p"], ops["w2p"], ops["b2p"], ops["w3p"], ops["b3p"])

    if out_padded:
        return out                                 # (B, 128) f32, lanes 70.. are zero
    # Demo convenience: drop lane padding and restore (B, 5, 14).  Real
    # consumers should prefer out_padded=True to avoid this extra XLA pass.
    return out[:, :IN_FEATURES].reshape(B, C, Nn)


# ----------------------------------------------------------------------------
# Plain-JAX f32 reference (mirrors the PyTorch module exactly).
# ----------------------------------------------------------------------------
def reference_forward(x, p):
    leaky = lambda v: jnp.where(v >= 0, v, NEG_SLOPE * v)
    B, C, Nn = x.shape
    h = x.reshape(B, C * Nn)
    h = leaky(h @ p["w1"].T + p["b1"])
    h = leaky(h @ p["w2"].T + p["b2"])
    h = leaky(h @ p["w3"].T + p["b3"])
    return h.reshape(B, C, Nn)


if __name__ == "__main__":
    key = jax.random.PRNGKey(0)
    k_params, k_x1, k_x2 = jax.random.split(key, 3)

    params = make_params(k_params)
    ops = build_operands(params)

    ok = True

    # 1) Small demo batch (B=2): single grid step, partial (8-row) batch tile.
    x_small = jax.random.normal(k_x1, (2, N_CHANNELS, N), jnp.float32)
    out_small = jax.block_until_ready(formant_transformer_forward(x_small, ops))
    ref_small = reference_forward(x_small, params)
    ok &= out_small.shape == (2, N_CHANNELS, N)
    # bf16 MXU operands -> ~1e-2 relative error vs f32 reference.
    ok &= bool(jnp.allclose(out_small, ref_small, atol=5e-2, rtol=5e-2))

    # 2) Larger batch: exercises a 2-step "parallel" grid with an uneven tail tile.
    x_big = jax.random.normal(k_x2, (300, N_CHANNELS, N), jnp.float32)
    out_big = jax.block_until_ready(formant_transformer_forward(x_big, ops))
    ref_big = reference_forward(x_big, params)
    ok &= out_big.shape == (300, N_CHANNELS, N)
    ok &= bool(jnp.allclose(out_big, ref_big, atol=5e-2, rtol=5e-2))

    assert ok, "kernel/ref mismatch"
    print("KERNEL_OK")
</pallas_src>

<mosaic_0001>
module attributes {stable_mosaic.version = 11 : i64} {
  func.func @formant_kernel(%arg0: i32, %arg1: memref<8x70xf32, #tpu.memory_space<vmem>>, %arg2: memref<70x128xbf16, #tpu.memory_space<vmem>>, %arg3: memref<1x128xf32, #tpu.memory_space<vmem>>, %arg4: memref<128x128xbf16, #tpu.memory_space<vmem>>, %arg5: memref<1x128xf32, #tpu.memory_space<vmem>>, %arg6: memref<128x128xbf16, #tpu.memory_space<vmem>>, %arg7: memref<1x128xf32, #tpu.memory_space<vmem>>, %arg8: memref<8x128xf32, #tpu.memory_space<vmem>>) attributes {dimension_semantics = [#tpu.dimension_semantics<parallel>], iteration_bounds = array<i64: 1>, scalar_prefetch = 0 : i64, scratch_operands = 0 : i64, tpu.core_type = #tpu.core_type<tc>, window_params = [{transform_indices = @transform_0, window_bounds = array<i64: 8, 70>}, {pipeline_mode = #tpu.pipeline_mode<synchronous>, transform_indices = @transform_1, window_bounds = array<i64: 70, 128>}, {pipeline_mode = #tpu.pipeline_mode<synchronous>, transform_indices = @transform_2, window_bounds = array<i64: 1, 128>}, {pipeline_mode = #tpu.pipeline_mode<synchronous>, transform_indices = @transform_3, window_bounds = array<i64: 128, 128>}, {pipeline_mode = #tpu.pipeline_mode<synchronous>, transform_indices = @transform_4, window_bounds = array<i64: 1, 128>}, {pipeline_mode = #tpu.pipeline_mode<synchronous>, transform_indices = @transform_5, window_bounds = array<i64: 128, 128>}, {pipeline_mode = #tpu.pipeline_mode<synchronous>, transform_indices = @transform_6, window_bounds = array<i64: 1, 128>}, {transform_indices = @transform_7, window_bounds = array<i64: 8, 128>}]} {
    %c0 = arith.constant 0 : index
    %c0_0 = arith.constant 0 : index
    %0 = vector.load %arg1[%c0, %c0_0] : memref<8x70xf32, #tpu.memory_space<vmem>>, vector<8x70xf32>
    %1 = arith.truncf %0 : vector<8x70xf32> to vector<8x70xbf16>
    %c0_1 = arith.constant 0 : index
    %c0_2 = arith.constant 0 : index
    %2 = vector.load %arg2[%c0_1, %c0_2] : memref<70x128xbf16, #tpu.memory_space<vmem>>, vector<70x128xbf16>
    %cst = arith.constant dense<0.000000e+00> : vector<8x128xf32>
    %3 = tpu.matmul %1, %2, %cst {dimension_numbers = #tpu.dot_dimension_numbers<[1], [0], [0], [1], [0, 0, 1, 1], [], []>} : vector<8x70xbf16>, vector<70x128xbf16>, vector<8x128xf32> -> vector<8x128xf32>
    %c0_3 = arith.constant 0 : index
    %c0_4 = arith.constant 0 : index
    %4 = vector.load %arg3[%c0_3, %c0_4] : memref<1x128xf32, #tpu.memory_space<vmem>>, vector<1x128xf32>
    %5 = vector.broadcast %4 : vector<1x128xf32> to vector<8x128xf32>
    %6 = arith.addf %3, %5 : vector<8x128xf32>
    %cst_5 = arith.constant 2.000000e-01 : f32
    %7 = vector.broadcast %cst_5 : f32 to vector<8x128xf32>
    %8 = arith.mulf %7, %6 : vector<8x128xf32>
    %9 = arith.maximumf %6, %8 : vector<8x128xf32>
    %10 = arith.truncf %9 : vector<8x128xf32> to vector<8x128xbf16>
    %c0_6 = arith.constant 0 : index
    %c0_7 = arith.constant 0 : index
    %11 = vector.load %arg4[%c0_6, %c0_7] : memref<128x128xbf16, #tpu.memory_space<vmem>>, vector<128x128xbf16>
    %cst_8 = arith.constant dense<0.000000e+00> : vector<8x128xf32>
    %12 = tpu.matmul %10, %11, %cst_8 {dimension_numbers = #tpu.dot_dimension_numbers<[1], [0], [0], [1], [0, 0, 1, 1], [], []>} : vector<8x128xbf16>, vector<128x128xbf16>, vector<8x128xf32> -> vector<8x128xf32>
    %c0_9 = arith.constant 0 : index
    %c0_10 = arith.constant 0 : index
    %13 = vector.load %arg5[%c0_9, %c0_10] : memref<1x128xf32, #tpu.memory_space<vmem>>, vector<1x128xf32>
    %14 = vector.broadcast %13 : vector<1x128xf32> to vector<8x128xf32>
    %15 = arith.addf %12, %14 : vector<8x128xf32>
    %cst_11 = arith.constant 2.000000e-01 : f32
    %16 = vector.broadcast %cst_11 : f32 to vector<8x128xf32>
    %17 = arith.mulf %16, %15 : vector<8x128xf32>
    %18 = arith.maximumf %15, %17 : vector<8x128xf32>
    %19 = arith.truncf %18 : vector<8x128xf32> to vector<8x128xbf16>
    %c0_12 = arith.constant 0 : index
    %c0_13 = arith.constant 0 : index
    %20 = vector.load %arg6[%c0_12, %c0_13] : memref<128x128xbf16, #tpu.memory_space<vmem>>, vector<128x128xbf16>
    %cst_14 = arith.constant dense<0.000000e+00> : vector<8x128xf32>
    %21 = tpu.matmul %19, %20, %cst_14 {dimension_numbers = #tpu.dot_dimension_numbers<[1], [0], [0], [1], [0, 0, 1, 1], [], []>} : vector<8x128xbf16>, vector<128x128xbf16>, vector<8x128xf32> -> vector<8x128xf32>
    %c0_15 = arith.constant 0 : index
    %c0_16 = arith.constant 0 : index
    %22 = vector.load %arg7[%c0_15, %c0_16] : memref<1x128xf32, #tpu.memory_space<vmem>>, vector<1x128xf32>
    %23 = vector.broadcast %22 : vector<1x128xf32> to vector<8x128xf32>
    %24 = arith.addf %21, %23 : vector<8x128xf32>
    %cst_17 = arith.constant 2.000000e-01 : f32
    %25 = vector.broadcast %cst_17 : f32 to vector<8x128xf32>
    %26 = arith.mulf %25, %24 : vector<8x128xf32>
    %27 = arith.maximumf %24, %26 : vector<8x128xf32>
    %c0_18 = arith.constant 0 : index
    %c0_19 = arith.constant 0 : index
    %28 = vector.load %arg8[%c0_18, %c0_19] : memref<8x128xf32, #tpu.memory_space<vmem>>, vector<8x128xf32>
    tpu.vector_store %arg8[%c0_18, %c0_19], %27 {strides = array<i32>} : memref<8x128xf32, #tpu.memory_space<vmem>>, vector<8x128xf32>,
    return
  }
  func.func @transform_0(%arg0: i32) -> (i32, i32) {
    %c0_i32 = arith.constant 0 : i32
    %c0_i32_0 = arith.constant 0 : i32
    return %arg0, %c0_i32 : i32, i32
  }
  func.func @transform_1(%arg0: i32) -> (i32, i32) {
    %c0_i32 = arith.constant 0 : i32
    %c0_i32_0 = arith.constant 0 : i32
    %c0_i32_1 = arith.constant 0 : i32
    return %c0_i32, %c0_i32_0 : i32, i32
  }
  func.func @transform_2(%arg0: i32) -> (i32, i32) {
    %c0_i32 = arith.constant 0 : i32
    %c0_i32_0 = arith.constant 0 : i32
    %c0_i32_1 = arith.constant 0 : i32
    return %c0_i32, %c0_i32_0 : i32, i32
  }
  func.func @transform_3(%arg0: i32) -> (i32, i32) {
    %c0_i32 = arith.constant 0 : i32
    %c0_i32_0 = arith.constant 0 : i32
    %c0_i32_1 = arith.constant 0 : i32
    return %c0_i32, %c0_i32_0 : i32, i32
  }
  func.func @transform_4(%arg0: i32) -> (i32, i32) {
    %c0_i32 = arith.constant 0 : i32
    %c0_i32_0 = arith.constant 0 : i32
    %c0_i32_1 = arith.constant 0 : i32
    return %c0_i32, %c0_i32_0 : i32, i32
  }
  func.func @transform_5(%arg0: i32) -> (i32, i32) {
    %c0_i32 = arith.constant 0 : i32
    %c0_i32_0 = arith.constant 0 : i32
    %c0_i32_1 = arith.constant 0 : i32
    return %c0_i32, %c0_i32_0 : i32, i32
  }
  func.func @transform_6(%arg0: i32) -> (i32, i32) {
    %c0_i32 = arith.constant 0 : i32
    %c0_i32_0 = arith.constant 0 : i32
    %c0_i32_1 = arith.constant 0 : i32
    return %c0_i32, %c0_i32_0 : i32, i32
  }
  func.func @transform_7(%arg0: i32) -> (i32, i32) {
    %c0_i32 = arith.constant 0 : i32
    %c0_i32_0 = arith.constant 0 : i32
    return %arg0, %c0_i32 : i32, i32
  }
}

</mosaic_0001>

<llo_original>
// kernel: formant_transformer_forward.1
$region0: #{formant_transformer_forward.1}
  #allocation0 [shape = 'u32[]', space=smem, size = 0x4, offset = 0x4, fixed_abs, tag = 'smem constant byte address 0x4 - core index']
  #allocation1 [shape = 'u32[144,128]{1,0:T(1,128)}', space=vmem, size = 0x12000, scoped, tag = 'internal scratch']
  %s0 = inlined_call_operand.vmem [shape: f32[2,70], index: 0, kind: input, shape index: {}]
  %s1 = inlined_call_operand.hbm [shape: bf16[70,128], index: 1, kind: input, shape index: {}]
  %s2 = inlined_call_operand.vmem [shape: f32[1,128], index: 2, kind: input, shape index: {}]
  %s3 = inlined_call_operand.hbm [shape: bf16[128,128], index: 3, kind: input, shape index: {}]
  %s4 = inlined_call_operand.vmem [shape: f32[1,128], index: 4, kind: input, shape index: {}]
  %s5 = inlined_call_operand.vmem [shape: bf16[128,128], index: 5, kind: input, shape index: {}]
  %s6 = inlined_call_operand.hbm [shape: f32[1,128], index: 6, kind: input, shape index: {}]
  %s7 = inlined_call_operand.vmem [shape: f32[2,128], index: 7, kind: output, shape index: {}]
  %s8 = sld [smem:[#allocation0]]
  $region80: #{formant_transformer_forward.1} parent=0
    _
  %s10 = ssub.s32 1, %s8
  %s11 = scalar_select 0, %s10, %s8
  $region1: #{formant_transformer_forward.1} parent=0
    #allocation2 [shape = 'u8[18432]{0}', space=vmem, size = 0x4800, scoped, tag = 'input window, operand 1, single buffered']
    #allocation3 [shape = 's32[1]{0}', space=sflag, size = 0x4, scoped, tag = 'scoped memory for formant_transformer_forward.1']
    #allocation4 [shape = 'u8[32768]{0}', space=vmem, size = 0x8000, scoped, tag = 'input window, operand 3, single buffered']
    #allocation5 [shape = 's32[1]{0}', space=sflag, size = 0x4, scoped, tag = 'scoped memory for formant_transformer_forward.1']
    #allocation6 [shape = 'u8[512]{0}', space=vmem, size = 0x400, scoped, tag = 'input window, operand 6, single buffered']
    #allocation7 [shape = 'u8[4096]{0}', space=vmem, size = 0x1000, scoped, tag = 'output window, operand 0, single buffered']
    %12 = vsyncpa [#allocation3], 0
    %13 = vsyncpa [#allocation5], 0
    // Predicated region
    $region2: #{formant_transformer_forward.1} parent=1 // pred_check
      _
    $region3: #{formant_transformer_forward.1} parent=1 // pred_check_branch
      %15 = sbr.rel (0) target = $region5
    $region4: #{formant_transformer_forward.1} parent=1 // pred_region
      _
    $region5: #{formant_transformer_forward.1} parent=1 // pred_fallthru
      _
    // Predicated region
    $region6: #{formant_transformer_forward.1} parent=1 // pred_check
      _
    $region7: #{formant_transformer_forward.1} parent=1 // pred_check_branch
      %17 = sbr.rel (0) target = $region9
    $region8: #{formant_transformer_forward.1} parent=1 // pred_region
      %s19 = ssub.s32 576, 576
      %20 = vsyncadd [#allocation3], %s19
      %s21 = sshll.u32 [#allocation2], 4
      %s22 = int_to_ptr.vmem [resolvable:$true] %s21
      %27 = dma.hbm_to_vmem [thread:$0]  %s1, 576, %s22, [#allocation3], 64, 64, 4
    $region9: #{formant_transformer_forward.1} parent=1 // pred_fallthru
      _
    // Predicated region
    $region10: #{formant_transformer_forward.1} parent=1 // pred_check
      _
    $region11: #{formant_transformer_forward.1} parent=1 // pred_check_branch
      %29 = sbr.rel (0) target = $region13
    $region12: #{formant_transformer_forward.1} parent=1 // pred_region
      _
    $region13: #{formant_transformer_forward.1} parent=1 // pred_fallthru
      _
    // Predicated region
    $region14: #{formant_transformer_forward.1} parent=1 // pred_check
      _
    $region15: #{formant_transformer_forward.1} parent=1 // pred_check_branch
      %31 = sbr.rel (0) target = $region17
    $region16: #{formant_transformer_forward.1} parent=1 // pred_region
      %s33 = ssub.s32 1024, 1024
      %34 = vsyncadd [#allocation5], %s33
      %s35 = sshll.u32 [#allocation4], 4
      %s36 = int_to_ptr.vmem [resolvable:$true] %s35
      %41 = dma.hbm_to_vmem [thread:$0]  %s3, 1024, %s36, [#allocation5], 64, 64, 4
    $region17: #{formant_transformer_forward.1} parent=1 // pred_fallthru
      _
    // Predicated region
    $region18: #{formant_transformer_forward.1} parent=1 // pred_check
      _
    $region19: #{formant_transformer_forward.1} parent=1 // pred_check_branch
      %43 = sbr.rel (0) target = $region21
    $region20: #{formant_transformer_forward.1} parent=1 // pred_region
      _
    $region21: #{formant_transformer_forward.1} parent=1 // pred_fallthru
      _
    // Predicated region
    $region22: #{formant_transformer_forward.1} parent=1 // pred_check
      _
    $region23: #{formant_transformer_forward.1} parent=1 // pred_check_branch
      %45 = sbr.rel (0) target = $region25
    $region24: #{formant_transformer_forward.1} parent=1 // pred_region
      _
    $region25: #{formant_transformer_forward.1} parent=1 // pred_fallthru
      _
    // Predicated region
    $region26: #{formant_transformer_forward.1} parent=1 // pred_check
      _
    $region27: #{formant_transformer_forward.1} parent=1 // pred_check_branch
      %47 = sbr.rel (0) target = $region29
    $region28: #{formant_transformer_forward.1} parent=1 // pred_region
      %s49 = ssub.s32 16, 16
      %50 = vsyncadd [#allocation5], %s49
      %s52 = sshll.u32 [#allocation6], 4
      %s53 = int_to_ptr.vmem [resolvable:$true] %s52
      %55 = dma.hbm_to_vmem [thread:$0]  %s6, 16, %s53, [#allocation5]
    $region29: #{formant_transformer_forward.1} parent=1 // pred_fallthru
      _
    // Predicated region
    $region30: #{formant_transformer_forward.1} parent=1 // pred_check
      _
    $region31: #{formant_transformer_forward.1} parent=1 // pred_check_branch
      %57 = sbr.rel (0) target = $region33
    $region32: #{formant_transformer_forward.1} parent=1 // pred_region
      %58 = dma.done [#allocation3], 576
    $region33: #{formant_transformer_forward.1} parent=1 // pred_fallthru
      _
    // Predicated region
    $region34: #{formant_transformer_forward.1} parent=1 // pred_check
      _
    $region35: #{formant_transformer_forward.1} parent=1 // pred_check_branch
      %60 = sbr.rel (0) target = $region37
    $region36: #{formant_transformer_forward.1} parent=1 // pred_region
      %61 = dma.done [#allocation5], 1024
    $region37: #{formant_transformer_forward.1} parent=1 // pred_fallthru
      _
    // Predicated region
    $region38: #{formant_transformer_forward.1} parent=1 // pred_check
      _
    $region39: #{formant_transformer_forward.1} parent=1 // pred_check_branch
      %63 = sbr.rel (0) target = $region41
    $region40: #{formant_transformer_forward.1} parent=1 // pred_region
      %64 = dma.done [#allocation5], 16
    $region41: #{formant_transformer_forward.1} parent=1 // pred_fallthru
      _
    %v66 = vld [vmem:[%s0] sm:$0xff]
    %v67 = vpack.c.bf16 %v66, %v66
    %v68 = vld [vmem:[#allocation2] sm:$0xf]
    %v69 = vld [vmem:[#allocation2 + $0x4] sm:$0xf]
    %v70 = vld [vmem:[#allocation2 + $0x8] sm:$0xf]
    %v71 = vld [vmem:[#allocation2 + $0xc] sm:$0xf]
    %v72 = vld [vmem:[#allocation2 + $0x10] sm:$0xf]
    %v73 = vld [vmem:[#allocation2 + $0x14] sm:$0xf]
    %v74 = vld [vmem:[#allocation2 + $0x18] sm:$0xf]
    %v75 = vld [vmem:[#allocation2 + $0x1c] sm:$0xf]
    %v76 = vld [vmem:[#allocation2 + $0x20] sm:$0x7]
    %v77 = vld [vmem:[%s2] sm:$0x1]
    %v79 = vlaneseq
    %v80 = vshrl.u32 %v79, 7
    %v81 = vsub.s32 0, %v80
    %v82 = vrot.slane %v77, %v81
    %v93 = vunpack.c.l.b16 %v68
    %v94 = vunpack.c.l.b16 %v69
    %v95 = vunpack.c.l.b16 %v70
    %v96 = vunpack.c.l.b16 %v71
    %v97 = vunpack.c.l.b16 %v72
    %v98 = vunpack.c.l.b16 %v73
    %v99 = vunpack.c.l.b16 %v74
    %v100 = vunpack.c.l.b16 %v75
    %v101 = vunpack.c.l.b16 %v76
    %v102 = vpack.c.b16 %v94, %v93
    %v103 = vpack.c.b16 %v96, %v95
    %v104 = vpack.c.b16 %v98, %v97
    %v105 = vpack.c.b16 %v100, %v99
    %v106 = vpack.c.b16 %v101, %v101
    %vm111 = vcmask 572416
    %v113 = vsel %vm111, %v67, 0
    %vm115 = vcmask 1042432
    %v117 = vsel %vm115, %v106, 0
    %119 = vmatprep.subr.bf16.mxu0 0
    %120 = vmatpush1.bf16.msra.mxu0 %v102
    %121 = vmatprep.subr.bf16.mxu0 0
    %122 = vmatpush1.bf16.msra.mxu0 %v103
    %123 = vmatprep.subr.bf16.mxu0 0
    %124 = vmatpush1.bf16.msra.mxu0 %v104
    %125 = vmatprep.subr.bf16.mxu0 0
    %126 = vmatpush1.bf16.msra.mxu0 %v105
    %127 = vmatprep.subr.bf16.mxu0 0
    %128 = vmatpush1.bf16.msra.mxu0 %v117
    %129 = vmatprep.subr.bf16.mxu0 0
    %130 = vmatpush1.bf16.msra.mxu0 0
    %131 = vmatprep.subr.bf16.mxu0 0
    %132 = vmatpush1.bf16.msra.mxu0 0
    %133 = vmatprep.subr.bf16.mxu0 0
    %134 = vmatpush1.bf16.msra.mxu0 0
    %135 = vmatprep.subr.bf16.mxu0 0
    %136 = vmatpush1.bf16.msra.mxu0 0
    %137 = vmatprep.subr.bf16.mxu0 0
    %138 = vmatpush1.bf16.msra.mxu0 0
    %139 = vmatprep.subr.bf16.mxu0 0
    %140 = vmatpush1.bf16.msra.mxu0 0
    %141 = vmatprep.subr.bf16.mxu0 0
    %142 = vmatpush1.bf16.msra.mxu0 0
    %143 = vmatprep.subr.bf16.mxu0 0
    %144 = vmatpush1.bf16.msra.mxu0 0
    %145 = vmatprep.subr.bf16.mxu0 0
    %146 = vmatpush1.bf16.msra.mxu0 0
    %147 = vmatprep.subr.bf16.mxu0 0
    %148 = vmatpush1.bf16.msra.mxu0 0
    %149 = vmatprep.subr.bf16.mxu0 0
    %150 = vmatpush1.bf16.msra.mxu0 0
    %151 = vmatprep.mubr.bf16.mxu0 0
    %152 = vmatmul.mubr.bf16.gmra.mrb[0].mxu0 %v113
    %v153 = vpop.f32.mrb[0].mxu0
    %v154 = vadd.f32 %v82, %v153
    %v155 = vpop.f32.mrb[0].mxu0
    %v156 = vpop.f32.mrb[0].mxu0
    %v157 = vpop.f32.mrb[0].mxu0
    %158 = vdwg.mxu0
    %v159 = vmul.f32 %v154, 0.2
    %v160 = vmax.f32 %v154, %v159
    %v161 = vpack.c.bf16 %v160, %v160
    %v162 = vld [vmem:[#allocation4] sm:$0xf]
    %v163 = vld [vmem:[#allocation4 + $0x4] sm:$0xf]
    %v164 = vld [vmem:[#allocation4 + $0x8] sm:$0xf]
    %v165 = vld [vmem:[#allocation4 + $0xc] sm:$0xf]
    %v166 = vld [vmem:[#allocation4 + $0x10] sm:$0xf]
    %v167 = vld [vmem:[#allocation4 + $0x14] sm:$0xf]
    %v168 = vld [vmem:[#allocation4 + $0x18] sm:$0xf]
    %v169 = vld [vmem:[#allocation4 + $0x1c] sm:$0xf]
    %v170 = vld [vmem:[#allocation4 + $0x20] sm:$0xf]
    %v171 = vld [vmem:[#allocation4 + $0x24] sm:$0xf]
    %v172 = vld [vmem:[#allocation4 + $0x28] sm:$0xf]
    %v173 = vld [vmem:[#allocation4 + $0x2c] sm:$0xf]
    %v174 = vld [vmem:[#allocation4 + $0x30] sm:$0xf]
    %v175 = vld [vmem:[#allocation4 + $0x34] sm:$0xf]
    %v176 = vld [vmem:[#allocation4 + $0x38] sm:$0xf]
    %v177 = vld [vmem:[#allocation4 + $0x3c] sm:$0xf]
    %v178 = vld [vmem:[%s4] sm:$0x1]
    %v180 = vlaneseq
    %v181 = vshrl.u32 %v180, 7
    %v182 = vsub.s32 0, %v181
    %v183 = vrot.slane %v178, %v182
    %v201 = vunpack.c.l.b16 %v162
    %v202 = vunpack.c.l.b16 %v163
    %v203 = vunpack.c.l.b16 %v164
    %v204 = vunpack.c.l.b16 %v165
    %v205 = vunpack.c.l.b16 %v166
    %v206 = vunpack.c.l.b16 %v167
    %v207 = vunpack.c.l.b16 %v168
    %v208 = vunpack.c.l.b16 %v169
    %v209 = vunpack.c.l.b16 %v170
    %v210 = vunpack.c.l.b16 %v171
    %v211 = vunpack.c.l.b16 %v172
    %v212 = vunpack.c.l.b16 %v173
    %v213 = vunpack.c.l.b16 %v174
    %v214 = vunpack.c.l.b16 %v175
    %v215 = vunpack.c.l.b16 %v176
    %v216 = vunpack.c.l.b16 %v177
    %v217 = vpack.c.b16 %v202, %v201
    %v218 = vpack.c.b16 %v204, %v203
    %v219 = vpack.c.b16 %v206, %v205
    %v220 = vpack.c.b16 %v208, %v207
    %v221 = vpack.c.b16 %v210, %v209
    %v222 = vpack.c.b16 %v212, %v211
    %v223 = vpack.c.b16 %v214, %v213
    %v224 = vpack.c.b16 %v216, %v215
    %233 = vmatprep.subr.bf16.mxu0 0
    %234 = vmatpush1.bf16.msra.mxu0 %v217
    %235 = vmatprep.subr.bf16.mxu0 0
    %236 = vmatpush1.bf16.msra.mxu0 %v218
    %237 = vmatprep.subr.bf16.mxu0 0
    %238 = vmatpush1.bf16.msra.mxu0 %v219
    %239 = vmatprep.subr.bf16.mxu0 0
    %240 = vmatpush1.bf16.msra.mxu0 %v220
    %241 = vmatprep.subr.bf16.mxu0 0
    %242 = vmatpush1.bf16.msra.mxu0 %v221
    %243 = vmatprep.subr.bf16.mxu0 0
    %244 = vmatpush1.bf16.msra.mxu0 %v222
    %245 = vmatprep.subr.bf16.mxu0 0
    %246 = vmatpush1.bf16.msra.mxu0 %v223
    %247 = vmatprep.subr.bf16.mxu0 0
    %248 = vmatpush1.bf16.msra.mxu0 %v224
    %249 = vmatprep.subr.bf16.mxu0 0
    %250 = vmatpush1.bf16.msra.mxu0 0
    %251 = vmatprep.subr.bf16.mxu0 0
    %252 = vmatpush1.bf16.msra.mxu0 0
    %253 = vmatprep.subr.bf16.mxu0 0
    %254 = vmatpush1.bf16.msra.mxu0 0
    %255 = vmatprep.subr.bf16.mxu0 0
    %256 = vmatpush1.bf16.msra.mxu0 0
    %257 = vmatprep.subr.bf16.mxu0 0
    %258 = vmatpush1.bf16.msra.mxu0 0
    %259 = vmatprep.subr.bf16.mxu0 0
    %260 = vmatpush1.bf16.msra.mxu0 0
    %261 = vmatprep.subr.bf16.mxu0 0
    %262 = vmatpush1.bf16.msra.mxu0 0
    %263 = vmatprep.subr.bf16.mxu0 0
    %264 = vmatpush1.bf16.msra.mxu0 0
    %265 = vmatprep.mubr.bf16.mxu0 0
    %266 = vmatmul.mubr.bf16.gmra.mrb[0].mxu0 %v161
    %v267 = vpop.f32.mrb[0].mxu0
    %v268 = vadd.f32 %v183, %v267
    %v269 = vpop.f32.mrb[0].mxu0
    %v270 = vpop.f32.mrb[0].mxu0
    %v271 = vpop.f32.mrb[0].mxu0
    %272 = vdwg.mxu0
    %v273 = vmul.f32 %v268, 0.2
    %v274 = vmax.f32 %v268, %v273
    %v275 = vpack.c.bf16 %v274, %v274
    %v276 = vld [vmem:[%s5] sm:$0xf]
    %v277 = vld [vmem:[%s5 + $0x4] sm:$0xf]
    %v278 = vld [vmem:[%s5 + $0x8] sm:$0xf]
    %v279 = vld [vmem:[%s5 + $0xc] sm:$0xf]
    %v280 = vld [vmem:[%s5 + $0x10] sm:$0xf]
    %v281 = vld [vmem:[%s5 + $0x14] sm:$0xf]
    %v282 = vld [vmem:[%s5 + $0x18] sm:$0xf]
    %v283 = vld [vmem:[%s5 + $0x1c] sm:$0xf]
    %v284 = vld [vmem:[%s5 + $0x20] sm:$0xf]
    %v285 = vld [vmem:[%s5 + $0x24] sm:$0xf]
    %v286 = vld [vmem:[%s5 + $0x28] sm:$0xf]
    %v287 = vld [vmem:[%s5 + $0x2c] sm:$0xf]
    %v288 = vld [vmem:[%s5 + $0x30] sm:$0xf]
    %v289 = vld [vmem:[%s5 + $0x34] sm:$0xf]
    %v290 = vld [vmem:[%s5 + $0x38] sm:$0xf]
    %v291 = vld [vmem:[%s5 + $0x3c] sm:$0xf]
    %v292 = vld [vmem:[#allocation6] sm:$0x1]
    %v294 = vlaneseq
    %v295 = vshrl.u32 %v294, 7
    %v296 = vsub.s32 0, %v295
    %v297 = vrot.slane %v292, %v296
    %v315 = vunpack.c.l.b16 %v276
    %v316 = vunpack.c.l.b16 %v277
    %v317 = vunpack.c.l.b16 %v278
    %v318 = vunpack.c.l.b16 %v279
    %v319 = vunpack.c.l.b16 %v280
    %v320 = vunpack.c.l.b16 %v281
    %v321 = vunpack.c.l.b16 %v282
    %v322 = vunpack.c.l.b16 %v283
    %v323 = vunpack.c.l.b16 %v284
    %v324 = vunpack.c.l.b16 %v285
    %v325 = vunpack.c.l.b16 %v286
    %v326 = vunpack.c.l.b16 %v287
    %v327 = vunpack.c.l.b16 %v288
    %v328 = vunpack.c.l.b16 %v289
    %v329 = vunpack.c.l.b16 %v290
    %v330 = vunpack.c.l.b16 %v291
    %v331 = vpack.c.b16 %v316, %v315
    %v332 = vpack.c.b16 %v318, %v317
    %v333 = vpack.c.b16 %v320, %v319
    %v334 = vpack.c.b16 %v322, %v321
    %v335 = vpack.c.b16 %v324, %v323
    %v336 = vpack.c.b16 %v326, %v325
    %v337 = vpack.c.b16 %v328, %v327
    %v338 = vpack.c.b16 %v330, %v329
    %347 = vmatprep.subr.bf16.mxu0 0
    %348 = vmatpush1.bf16.msra.mxu0 %v331
    %349 = vmatprep.subr.bf16.mxu0 0
    %350 = vmatpush1.bf16.msra.mxu0 %v332
    %351 = vmatprep.subr.bf16.mxu0 0
    %352 = vmatpush1.bf16.msra.mxu0 %v333
    %353 = vmatprep.subr.bf16.mxu0 0
    %354 = vmatpush1.bf16.msra.mxu0 %v334
    %355 = vmatprep.subr.bf16.mxu0 0
    %356 = vmatpush1.bf16.msra.mxu0 %v335
    %357 = vmatprep.subr.bf16.mxu0 0
    %358 = vmatpush1.bf16.msra.mxu0 %v336
    %359 = vmatprep.subr.bf16.mxu0 0
    %360 = vmatpush1.bf16.msra.mxu0 %v337
    %361 = vmatprep.subr.bf16.mxu0 0
    %362 = vmatpush1.bf16.msra.mxu0 %v338
    %363 = vmatprep.subr.bf16.mxu0 0
    %364 = vmatpush1.bf16.msra.mxu0 0
    %365 = vmatprep.subr.bf16.mxu0 0
    %366 = vmatpush1.bf16.msra.mxu0 0
    %367 = vmatprep.subr.bf16.mxu0 0
    %368 = vmatpush1.bf16.msra.mxu0 0
    %369 = vmatprep.subr.bf16.mxu0 0
    %370 = vmatpush1.bf16.msra.mxu0 0
    %371 = vmatprep.subr.bf16.mxu0 0
    %372 = vmatpush1.bf16.msra.mxu0 0
    %373 = vmatprep.subr.bf16.mxu0 0
    %374 = vmatpush1.bf16.msra.mxu0 0
    %375 = vmatprep.subr.bf16.mxu0 0
    %376 = vmatpush1.bf16.msra.mxu0 0
    %377 = vmatprep.subr.bf16.mxu0 0
    %378 = vmatpush1.bf16.msra.mxu0 0
    %379 = vmatprep.mubr.bf16.mxu0 0
    %380 = vmatmul.mubr.bf16.gmra.mrb[0].mxu0 %v275
    %v381 = vpop.f32.mrb[0].mxu0
    %v382 = vadd.f32 %v297, %v381
    %v383 = vpop.f32.mrb[0].mxu0
    %v384 = vpop.f32.mrb[0].mxu0
    %v385 = vpop.f32.mrb[0].mxu0
    %386 = vdwg.mxu0
    %v387 = vmul.f32 %v382, 0.2
    %v388 = vmax.f32 %v382, %v387
    %389 = vst [vmem:[#allocation7] sm:$0xff] %v388
    // Predicated region
    $region42: #{formant_transformer_forward.1} parent=1 // pred_check
      _
    $region43: #{formant_transformer_forward.1} parent=1 // pred_check_branch
      %391 = sbr.rel (0) target = $region45
    $region44: #{formant_transformer_forward.1} parent=1 // pred_region
      // Predicated region
      $region46: #{formant_transformer_forward.1} parent=44 // pred_check
        _
      $region47: #{formant_transformer_forward.1} parent=44 // pred_check_branch
        %393 = sbr.rel (0) target = $region49
      $region48: #{formant_transformer_forward.1} parent=44 // pred_region
        // Predicated region
        $region50: #{formant_transformer_forward.1} parent=48 // pred_check
          _
        $region51: #{formant_transformer_forward.1} parent=48 // pred_check_branch
          %395 = sbr.rel target = $region53
        $region52: #{formant_transformer_forward.1} parent=48 // pred_region
          // Predicated region
          $region65: #{formant_transformer_forward.1} parent=52 // pred_check
            _
          $region66: #{formant_transformer_forward.1} parent=52 // pred_check_branch
            %410 = sbr.rel (0) target = $region68
          $region67: #{formant_transformer_forward.1} parent=52 // pred_region
            loop: start=0, step=1, limit=1
            $region69: #{formant_transformer_forward.1} parent=67 // loop_pre_header
              _
            $region70: #{formant_transformer_forward.1} parent=67 // loop_header
              %s413 = sphi 0, %s417
              %p414 = scmp.ge.s32.totalorder %s413, 1
              %s418 = sphi [#allocation7], [#allocation7]
              %s419 = sphi %s7, %s7
            $region71: #{formant_transformer_forward.1} parent=67 // loop_header_branch
              %416 = sbr.rel (%p414) target = $region75
            $region72: #{formant_transformer_forward.1} parent=67 // loop_body
              %v420 = vld [vmem:[%s418] sm:$0x3]
              %421 = vst [vmem:[%s419] sm:$0x3] %v420
            $region73: #{formant_transformer_forward.1} parent=67 // loop_footer
              %s417 = sadd.s32 1, %s413
            $region74: #{formant_transformer_forward.1} parent=67 // loop_footer_branch
              %412 = sbr.rel target = $region70
            $region75: #{formant_transformer_forward.1} parent=67 // loop_exit
              _
          $region68: #{formant_transformer_forward.1} parent=52 // pred_fallthru
            _
        $region53: #{formant_transformer_forward.1} parent=48 // pred_fallthru
          _
        // Predicated region
        $region54: #{formant_transformer_forward.1} parent=48 // pred_check
          _
        $region55: #{formant_transformer_forward.1} parent=48 // pred_check_branch
          %397 = sbr.rel (0) target = $region57
        $region56: #{formant_transformer_forward.1} parent=48 // pred_region
          loop: start=0, step=1, limit=1
          $region58: #{formant_transformer_forward.1} parent=56 // loop_pre_header
            _
          $region59: #{formant_transformer_forward.1} parent=56 // loop_header
            %s400 = sphi 0, %s404
            %p401 = scmp.ge.s32.totalorder %s400, 1
            %s405 = sphi [#allocation7], [#allocation7]
            %s406 = sphi %s7, %s7
          $region60: #{formant_transformer_forward.1} parent=56 // loop_header_branch
            %403 = sbr.rel (%p401) target = $region64
          $region61: #{formant_transformer_forward.1} parent=56 // loop_body
            %v407 = vld [vmem:[%s405] sm:$0x3]
            %408 = vst [vmem:[%s406] sm:$0x3] %v407
          $region62: #{formant_transformer_forward.1} parent=56 // loop_footer
            %s404 = sadd.s32 1, %s400
          $region63: #{formant_transformer_forward.1} parent=56 // loop_footer_branch
            %399 = sbr.rel target = $region59
          $region64: #{formant_transformer_forward.1} parent=56 // loop_exit
            _
        $region57: #{formant_transformer_forward.1} parent=48 // pred_fallthru
          _
      $region49: #{formant_transformer_forward.1} parent=44 // pred_fallthru
        _
      %422 = vnop
    $region45: #{formant_transformer_forward.1} parent=1 // pred_fallthru
      _
    // Predicated region
    $region76: #{formant_transformer_forward.1} parent=1 // pred_check
      _
    $region77: #{formant_transformer_forward.1} parent=1 // pred_check_branch
      %424 = sbr.rel (0) target = $region79
    $region78: #{formant_transformer_forward.1} parent=1 // pred_region
      _
    $region79: #{formant_transformer_forward.1} parent=1 // pred_fallthru
      _
    %425 = vsyncpa [#allocation3], 1
    %426 = vsyncpa [#allocation5], 1

</llo_original>
